<compile_context>
chip_gen: v5e
topology: v5e:2x2
jax: 0.10.0
libtpu: 0.0.40
codegen_flags: <defaults>
</compile_context>

<pallas_src>
import functools

import jax
import jax.numpy as jnp
from jax.experimental import pallas as pl
from jax.experimental.pallas import tpu as pltpu


def _largest_divisor_leq(n, cap):
    for d in range(max(1, min(n, cap)), 0, -1):
        if n % d == 0:
            return d
    return 1


def _entropy_kernel(x_ref, out_ref, acc_ref, *, s_total, t_hw, n_tiles, tpg,
                    need_mask, compute_f32, approx_recip):
    """x_ref: (bt, C, t_hw) tile (channels on sublanes, spatial on lanes).
    out_ref: (bt, 1, 1) per-(batch, split-group) partial sum.
    acc_ref: (bt, 1, t_hw) f32 per-lane partial-entropy accumulator."""
    g = pl.program_id(1)   # spatial split-group (v7x dual-core helper)
    j = pl.program_id(2)   # spatial tile within the group

    @pl.when(j == 0)
    def _():
        acc_ref[...] = jnp.zeros_like(acc_ref)

    x = x_ref[...]                                           # (bt, C, t_hw)
    if compute_f32:
        x = x.astype(jnp.float32)
    m = jnp.max(x, axis=1, keepdims=True)                    # (bt, 1, t_hw)
    xm = x - m
    e = jnp.exp(xm)                                          # (bt, C, t_hw)
    s = jnp.sum(e.astype(jnp.float32), axis=1, keepdims=True)
    w = jnp.sum((e * xm).astype(jnp.float32), axis=1, keepdims=True)
    # H = -sum_i p_i log p_i = log(s) - sum_i e_i*(x_i - m) / s
    ent = jnp.log(s) - w * pl.reciprocal(s, approx=approx_recip)

    if need_mask:
        gidx = g * tpg + j   # global (unclamped) spatial-tile index

        @pl.when(gidx >= n_tiles - 1)        # tail / fully-padded tiles only
        def _():
            lane = jax.lax.broadcasted_iota(jnp.int32, ent.shape, 2)
            # select, not multiply: padding garbage may be Inf/NaN
            acc_ref[...] += jnp.where(gidx * t_hw + lane < s_total, ent, 0.0)

        @pl.when(gidx < n_tiles - 1)         # interior tiles: no mask cost
        def _():
            acc_ref[...] += ent
    else:
        acc_ref[...] += ent

    @pl.when(j == tpg - 1)
    def _():
        out_ref[...] = jnp.sum(acc_ref[...], axis=2, keepdims=True)


def entropy_loss(x, *, lane_budget_bytes=1 << 20, approx_reciprocal=False):
    """Pallas equivalent of EntropyLoss().forward(x): softmax entropy over dim=1,
    averaged over every other dim."""
    if x.ndim == 2:
        # (N, C) edge case: put C on sublanes, batch on lanes.
        x3 = jnp.transpose(x)[None]
    else:
        # NCHW (or N, C, *spatial): free row-major reshape, channel stays on axis 1.
        x3 = x.reshape(x.shape[0], x.shape[1], -1)
    N, C, S = x3.shape

    # Lane tile: multiple of 128, sized so the f32 view of one tile is about
    # lane_budget_bytes (~1 MiB is already at the HBM roofline on all chips).
    c_pad = max(8, ((C + 7) // 8) * 8)            # sublane padding, 32-bit view
    t_cap = max(128, (lane_budget_bytes // (c_pad * 4)) // 128 * 128)
    if S <= t_cap:
        t_hw, n_tiles = S, 1                      # full-extent lane block
    else:
        t_hw, n_tiles = t_cap, pl.cdiv(S, t_cap)

    # Pack several batches per grid step when the spatial tile is small
    # (amortizes the ~0.35 us per-step overhead).  bt always divides N, so
    # there are never partial batch blocks.
    bt_cap = max(1, min(8, lane_budget_bytes // max(1, c_pad * t_hw * 4)))
    bt = _largest_divisor_leq(N, bt_cap) if n_tiles == 1 else 1

    # Split spatial tiles into two "parallel" groups when batch parallelism
    # alone cannot feed both v7x TensorCores (harmless on single-TC v5e/v6e).
    n_split = 2 if (n_tiles >= 2 and N < 4) else 1
    tpg = pl.cdiv(n_tiles, n_split)
    need_mask = (S % t_hw != 0) or (n_split * tpg != n_tiles)

    if n_split == 1:
        in_map = lambda n, g, j: (n, 0, j)
    elif n_split * tpg == n_tiles:
        in_map = lambda n, g, j: (n, 0, g * tpg + j)
    else:
        # Clamp fully-padded trailing tiles onto the last real tile; their
        # contribution is masked to zero in-kernel.
        in_map = lambda n, g, j: (n, 0, jnp.minimum(g * tpg + j, n_tiles - 1))

    kernel = functools.partial(
        _entropy_kernel,
        s_total=S, t_hw=t_hw, n_tiles=n_tiles, tpg=tpg, need_mask=need_mask,
        compute_f32=(x3.dtype != jnp.dtype(jnp.bfloat16)),
        approx_recip=approx_reciprocal)

    # Explicit VMEM limit only when huge C (t_hw floored at 128 lanes) would
    # overflow the smallest default scoped VMEM (16 MiB on v5e).
    itemsize = jnp.dtype(x3.dtype).itemsize
    est = (2 * bt * C * t_hw * itemsize          # double-buffered input tiles
           + bt * 8 * t_hw * 4                   # sublane-padded accumulator
           + 5 * bt * c_pad * t_hw * 4           # in-kernel f32 temporaries
           + (1 << 20))                          # headroom
    vmem_limit = min(int(est), 64 << 20) if est > (14 << 20) else None

    partials = pl.pallas_call(
        kernel,
        out_shape=jax.ShapeDtypeStruct((n_split, N, 1, 1), jnp.float32),
        grid_spec=pltpu.PrefetchScalarGridSpec(
            num_scalar_prefetch=0,
            grid=(N // bt, n_split, tpg),
            in_specs=[pl.BlockSpec((bt, C, t_hw), in_map)],
            out_specs=pl.BlockSpec((None, bt, 1, 1),
                                   lambda n, g, j: (g, n, 0, 0)),
            scratch_shapes=[pltpu.VMEM((bt, 1, t_hw), jnp.float32)],
        ),
        compiler_params=pltpu.CompilerParams(
            dimension_semantics=("parallel", "parallel", "arbitrary"),
            vmem_limit_bytes=vmem_limit),
    )(x3)  # input keeps its original dtype; any cast happens in-kernel.

    return (jnp.sum(partials) / jnp.float32(N * S)).astype(jnp.float32)


def _entropy_loss_ref(x):
    """Pure-JAX reference matching the PyTorch module."""
    logits = x.astype(jnp.float32)
    log_p = jax.nn.log_softmax(logits, axis=1)
    p = jnp.exp(log_p)
    return (-jnp.sum(p * log_p, axis=1)).mean()


if __name__ == "__main__":
    key = jax.random.PRNGKey(0)
    # small NCHW input consistent with a typical use of this loss on logits
    x = jax.random.normal(key, (2, 4, 16, 16), dtype=jnp.float32)

    out = jax.block_until_ready(entropy_loss(x))
    ref = jax.block_until_ready(_entropy_loss_ref(x))

    assert jnp.allclose(out, ref, rtol=1e-5, atol=1e-5), (out, ref)
    print("KERNEL_OK")
</pallas_src>

<mosaic_0001>
module attributes {stable_mosaic.version = 11 : i64} {
  func.func @_entropy_kernel(%arg0: i32, %arg1: i32, %arg2: i32, %arg3: memref<2x4x256xf32, #tpu.memory_space<vmem>>, %arg4: memref<1x2x1x1xf32, #tpu.memory_space<vmem>>, %arg5: memref<2x1x256xf32, #tpu.memory_space<vmem>>) attributes {dimension_semantics = [#tpu.dimension_semantics<parallel>, #tpu.dimension_semantics<parallel>, #tpu.dimension_semantics<arbitrary>], iteration_bounds = array<i64: 1, 1, 1>, scalar_prefetch = 0 : i64, scratch_operands = 1 : i64, tpu.core_type = #tpu.core_type<tc>, window_params = [{transform_indices = @transform_0, window_bounds = array<i64: 2, 4, 256>}, {transform_indices = @transform_1, window_bounds = array<i64: 1, 2, 1, 1>}]} {
    %c0_i32 = arith.constant 0 : i32
    %0 = arith.cmpi eq, %arg2, %c0_i32 : i32
    %1 = arith.extui %0 : i1 to i32
    %c0_i32_0 = arith.constant 0 : i32
    %2 = arith.cmpi ne, %1, %c0_i32_0 : i32
    scf.if %2 {
      %cst_13 = arith.constant 0.000000e+00 : f32
      %24 = vector.broadcast %cst_13 : f32 to vector<2x1x256xf32>
      %c0_14 = arith.constant 0 : index
      %c0_15 = arith.constant 0 : index
      %c0_16 = arith.constant 0 : index
      %25 = vector.load %arg5[%c0_14, %c0_15, %c0_16] : memref<2x1x256xf32, #tpu.memory_space<vmem>>, vector<2x1x256xf32>
      tpu.vector_store %arg5[%c0_14, %c0_15, %c0_16], %24 {strides = array<i32>} : memref<2x1x256xf32, #tpu.memory_space<vmem>>, vector<2x1x256xf32>,
    } else {
    }
    %c0 = arith.constant 0 : index
    %c0_1 = arith.constant 0 : index
    %c0_2 = arith.constant 0 : index
    %3 = vector.load %arg3[%c0, %c0_1, %c0_2] : memref<2x4x256xf32, #tpu.memory_space<vmem>>, vector<2x4x256xf32>
    %cst = arith.constant dense<0xFF800000> : vector<2x256xf32>
    %4 = vector.multi_reduction <maximumf>, %3, %cst [1] : vector<2x4x256xf32> to vector<2x256xf32>
    %5 = vector.shape_cast %4 : vector<2x256xf32> to vector<2x1x256xf32>
    %6 = vector.broadcast %5 : vector<2x1x256xf32> to vector<2x4x256xf32>
    %7 = arith.subf %3, %6 : vector<2x4x256xf32>
    %8 = math.exp %7 : vector<2x4x256xf32>
    %cst_3 = arith.constant dense<0.000000e+00> : vector<2x256xf32>
    %9 = vector.multi_reduction <add>, %8, %cst_3 [1] : vector<2x4x256xf32> to vector<2x256xf32>
    %10 = vector.shape_cast %9 : vector<2x256xf32> to vector<2x1x256xf32>
    %11 = arith.mulf %8, %7 : vector<2x4x256xf32>
    %cst_4 = arith.constant dense<0.000000e+00> : vector<2x256xf32>
    %12 = vector.multi_reduction <add>, %11, %cst_4 [1] : vector<2x4x256xf32> to vector<2x256xf32>
    %13 = vector.shape_cast %12 : vector<2x256xf32> to vector<2x1x256xf32>
    %14 = math.log %10 : vector<2x1x256xf32>
    %15 = tpu.reciprocal %10 : vector<2x1x256xf32> -> vector<2x1x256xf32>
    %16 = arith.mulf %13, %15 : vector<2x1x256xf32>
    %17 = arith.subf %14, %16 : vector<2x1x256xf32>
    %c0_5 = arith.constant 0 : index
    %c0_6 = arith.constant 0 : index
    %c0_7 = arith.constant 0 : index
    %18 = vector.load %arg5[%c0_5, %c0_6, %c0_7] : memref<2x1x256xf32, #tpu.memory_space<vmem>>, vector<2x1x256xf32>
    %19 = arith.addf %18, %17 : vector<2x1x256xf32>
    %c0_8 = arith.constant 0 : index
    %c0_9 = arith.constant 0 : index
    %c0_10 = arith.constant 0 : index
    %20 = vector.load %arg5[%c0_8, %c0_9, %c0_10] : memref<2x1x256xf32, #tpu.memory_space<vmem>>, vector<2x1x256xf32>
    tpu.vector_store %arg5[%c0_8, %c0_9, %c0_10], %19 {strides = array<i32>} : memref<2x1x256xf32, #tpu.memory_space<vmem>>, vector<2x1x256xf32>,
    %c0_i32_11 = arith.constant 0 : i32
    %21 = arith.cmpi eq, %arg2, %c0_i32_11 : i32
    %22 = arith.extui %21 : i1 to i32
    %c0_i32_12 = arith.constant 0 : i32
    %23 = arith.cmpi ne, %22, %c0_i32_12 : i32
    scf.if %23 {
      %c0_13 = arith.constant 0 : index
      %c0_14 = arith.constant 0 : index
      %c0_15 = arith.constant 0 : index
      %24 = vector.load %arg5[%c0_13, %c0_14, %c0_15] : memref<2x1x256xf32, #tpu.memory_space<vmem>>, vector<2x1x256xf32>
      %cst_16 = arith.constant dense<0.000000e+00> : vector<2x1xf32>
      %25 = vector.multi_reduction <add>, %24, %cst_16 [2] : vector<2x1x256xf32> to vector<2x1xf32>
      %26 = vector.shape_cast %25 : vector<2x1xf32> to vector<2x1x1xf32>
      %c0_17 = arith.constant 0 : index
      %c0_18 = arith.constant 0 : index
      %c0_19 = arith.constant 0 : index
      %c0_20 = arith.constant 0 : index
      %27 = vector.load %arg4[%c0_17, %c0_18, %c0_19, %c0_20] : memref<1x2x1x1xf32, #tpu.memory_space<vmem>>, vector<1x2x1x1xf32>
      %28 = vector.shape_cast %27 : vector<1x2x1x1xf32> to vector<2x1x1xf32>
      %29 = vector.shape_cast %26 : vector<2x1x1xf32> to vector<1x2x1x1xf32>
      tpu.vector_store %arg4[%c0_17, %c0_18, %c0_19, %c0_20], %29 {strides = array<i32>} : memref<1x2x1x1xf32, #tpu.memory_space<vmem>>, vector<1x2x1x1xf32>,
    } else {
    }
    return
  }
  func.func @transform_0(%arg0: i32, %arg1: i32, %arg2: i32) -> (i32, i32, i32) {
    %c0_i32 = arith.constant 0 : i32
    %c0_i32_0 = arith.constant 0 : i32
    return %arg0, %c0_i32, %arg2 : i32, i32, i32
  }
  func.func @transform_1(%arg0: i32, %arg1: i32, %arg2: i32) -> (i32, i32, i32, i32) {
    %c0_i32 = arith.constant 0 : i32
    %c0_i32_0 = arith.constant 0 : i32
    %c0_i32_1 = arith.constant 0 : i32
    return %arg1, %arg0, %c0_i32, %c0_i32_0 : i32, i32, i32, i32
  }
}

</mosaic_0001>

<llo_original>
// kernel: tpu_custom_call.1
$region0: #{tpu_custom_call.1}
  #allocation0 [shape = 'u32[]', space=smem, size = 0x4, offset = 0x4, fixed_abs, tag = 'smem constant byte address 0x4 - core index']
  #allocation1 [shape = 'u32[72,128]{1,0:T(1,128)}', space=vmem, size = 0x9000, scoped, tag = 'internal scratch']
  #allocation2 [shape = 'f32[2,1,256]{2,1,0:T(1,128)}', space=vmem, size = 0x800, scoped, tag = 'scratch operand']
  %s0 = inlined_call_operand.hbm [shape: f32[2,4,256], index: 0, kind: input, shape index: {}]
  %s1 = inlined_call_operand.vmem [shape: f32[1,2,1,1], index: 1, kind: output, shape index: {}]
  %s2 = sld [smem:[#allocation0]]
  $region26: #{tpu_custom_call.1} parent=0
    _
  %s4 = ssub.s32 1, %s2
  %s5 = scalar_select 0, %s4, %s2
  $region1: #{tpu_custom_call.1} parent=0
    #allocation3 [shape = 'u8[8192]{0}', space=vmem, size = 0x2000, scoped, tag = 'input window, operand 0, single buffered']
    #allocation4 [shape = 's32[1]{0}', space=sflag, size = 0x4, scoped, tag = 'scoped memory for tpu_custom_call.1']
    %6 = vsyncpa [#allocation4], 0
    // Predicated region
    $region2: #{tpu_custom_call.1} parent=1 // pred_check
      _
    $region3: #{tpu_custom_call.1} parent=1 // pred_check_branch
      %8 = sbr.rel (0) target = $region5
    $region4: #{tpu_custom_call.1} parent=1 // pred_region
      %10 = vsyncadd [#allocation4], 0
      %s11 = sshll.u32 %s0, 4
      %s12 = int_to_ptr.hbm [resolvable:$true] %s11
      %s13 = sshll.u32 [#allocation3], 4
      %s14 = int_to_ptr.vmem [resolvable:$true] %s13
      %19 = dma.hbm_to_vmem [thread:$0]  %s12, 256, %s14, [#allocation4], 128, 128, 8
    $region5: #{tpu_custom_call.1} parent=1 // pred_fallthru
      _
    // Predicated region
    $region6: #{tpu_custom_call.1} parent=1 // pred_check
      _
    $region7: #{tpu_custom_call.1} parent=1 // pred_check_branch
      %21 = sbr.rel (0) target = $region9
    $region8: #{tpu_custom_call.1} parent=1 // pred_region
      %23 = dma.done [#allocation4], 256
    $region9: #{tpu_custom_call.1} parent=1 // pred_fallthru
      _
    %p24 = scmp.eq.s32.totalorder 0, 0
    // Predicated region
    $region10: #{tpu_custom_call.1} parent=1 // pred_check
      %p25 = pneg %p24
    $region11: #{tpu_custom_call.1} parent=1 // pred_check_branch
      %27 = sbr.rel (%p25) target = $region13
    $region12: #{tpu_custom_call.1} parent=1 // pred_region
      %v28 = vlaneseq
      %vm29 = vcmp.ge.s32.totalorder %v28, 0
      %vm30 = vcmp.lt.s32.totalorder %v28, 256
      %vm31 = vmand %vm29, %vm30
      %32 = vst.msk [vmem:[#allocation2] sm:$0x3] %vm31, 0.0
      %33 = vst.msk [vmem:[#allocation2 + $0x2] sm:$0x3] %vm31, 0.0
    $region13: #{tpu_custom_call.1} parent=1 // pred_fallthru
      _
    %v34 = vld [vmem:[#allocation3] sm:$0xff]
    %v35 = vld [vmem:[#allocation3 + $0x8] sm:$0xff]
    %38 = vst [vmem:[#allocation1] ss:$2 sm:$0xff] %v34
    %v39 = vld.sshfl [vmem:[#allocation1] sm:$0xff pattern:$0x75316420]
    %v40 = vld.sshfl [vmem:[#allocation1 + $0x8] sm:$0xff pattern:$0x75316420]
    %s41 = scalar_lea.vmem [#allocation1], 16
    %42 = vst [vmem:[%s41] ss:$2 sm:$0xff] %v35
    %v43 = vld.sshfl [vmem:[#allocation1 + $0x10] sm:$0xff pattern:$0x75316420]
    %v44 = vld.sshfl [vmem:[#allocation1 + $0x18] sm:$0xff pattern:$0x75316420]
    %vm49 = vcmask 1043456
    %v50 = vsel %vm49, %v39, -inf
    %v51 = vrot.slane %v50, 4
    %v52 = vmax.f32 %v50, %v51
    %v53 = vrot.slane %v52, 2
    %v54 = vmax.f32 %v52, %v53
    %v55 = vrot.slane %v54, 1
    %v56 = vmax.f32 %v54, %v55
    %v57 = vsel %vm49, %v40, -inf
    %v58 = vrot.slane %v57, 4
    %v59 = vmax.f32 %v57, %v58
    %v60 = vrot.slane %v59, 2
    %v61 = vmax.f32 %v59, %v60
    %v62 = vrot.slane %v61, 1
    %v63 = vmax.f32 %v61, %v62
    %v64 = vsel %vm49, %v43, -inf
    %v65 = vrot.slane %v64, 4
    %v66 = vmax.f32 %v64, %v65
    %v67 = vrot.slane %v66, 2
    %v68 = vmax.f32 %v66, %v67
    %v69 = vrot.slane %v68, 1
    %v70 = vmax.f32 %v68, %v69
    %v71 = vsel %vm49, %v44, -inf
    %v72 = vrot.slane %v71, 4
    %v73 = vmax.f32 %v71, %v72
    %v74 = vrot.slane %v73, 2
    %v75 = vmax.f32 %v73, %v74
    %v76 = vrot.slane %v75, 1
    %v77 = vmax.f32 %v75, %v76
    %v82 = vrot.slane %v63, 4
    %v83 = vrot.slane %v77, 4
    %v84 = vsel %vm49, %v56, %v82
    %v85 = vsel %vm49, %v70, %v83
    %v88 = vsub.f32 %v34, %v84
    %v89 = vsub.f32 %v35, %v85
    %v90 = vmul.f32 %v88, 1.442695
    %v91 = vpow.pop %v90
    %v92 = vmul.f32 %v89, 1.442695
    %v93 = vpow.pop %v92
    %96 = vst [vmem:[#allocation1] ss:$2 sm:$0xff] %v91
    %v97 = vld.sshfl [vmem:[#allocation1] sm:$0xff pattern:$0x75316420]
    %v98 = vld.sshfl [vmem:[#allocation1 + $0x8] sm:$0xff pattern:$0x75316420]
    %s99 = scalar_lea.vmem [#allocation1], 16
    %100 = vst [vmem:[%s99] ss:$2 sm:$0xff] %v93
    %v101 = vld.sshfl [vmem:[#allocation1 + $0x10] sm:$0xff pattern:$0x75316420]
    %v102 = vld.sshfl [vmem:[#allocation1 + $0x18] sm:$0xff pattern:$0x75316420]
    %v107 = vsel %vm49, %v97, 0.0
    %v108 = vrot.slane %v107, 4
    %v109 = vadd.f32 %v107, %v108
    %v110 = vrot.slane %v109, 2
    %v111 = vadd.f32 %v109, %v110
    %v112 = vrot.slane %v111, 1
    %v113 = vadd.f32 %v111, %v112
    %v114 = vsel %vm49, %v98, 0.0
    %v115 = vrot.slane %v114, 4
    %v116 = vadd.f32 %v114, %v115
    %v117 = vrot.slane %v116, 2
    %v118 = vadd.f32 %v116, %v117
    %v119 = vrot.slane %v118, 1
    %v120 = vadd.f32 %v118, %v119
    %v121 = vsel %vm49, %v101, 0.0
    %v122 = vrot.slane %v121, 4
    %v123 = vadd.f32 %v121, %v122
    %v124 = vrot.slane %v123, 2
    %v125 = vadd.f32 %v123, %v124
    %v126 = vrot.slane %v125, 1
    %v127 = vadd.f32 %v125, %v126
    %v128 = vsel %vm49, %v102, 0.0
    %v129 = vrot.slane %v128, 4
    %v130 = vadd.f32 %v128, %v129
    %v131 = vrot.slane %v130, 2
    %v132 = vadd.f32 %v130, %v131
    %v133 = vrot.slane %v132, 1
    %v134 = vadd.f32 %v132, %v133
    %v135 = vmul.f32 %v91, %v88
    %v136 = vmul.f32 %v93, %v89
    %139 = vst [vmem:[#allocation1] ss:$2 sm:$0xff] %v135
    %v140 = vld.sshfl [vmem:[#allocation1] sm:$0xff pattern:$0x75316420]
    %v141 = vld.sshfl [vmem:[#allocation1 + $0x8] sm:$0xff pattern:$0x75316420]
    %s142 = scalar_lea.vmem [#allocation1], 16
    %143 = vst [vmem:[%s142] ss:$2 sm:$0xff] %v136
    %v144 = vld.sshfl [vmem:[#allocation1 + $0x10] sm:$0xff pattern:$0x75316420]
    %v145 = vld.sshfl [vmem:[#allocation1 + $0x18] sm:$0xff pattern:$0x75316420]
    %v150 = vsel %vm49, %v140, 0.0
    %v151 = vrot.slane %v150, 4
    %v152 = vadd.f32 %v150, %v151
    %v153 = vrot.slane %v152, 2
    %v154 = vadd.f32 %v152, %v153
    %v155 = vrot.slane %v154, 1
    %v156 = vadd.f32 %v154, %v155
    %v157 = vsel %vm49, %v141, 0.0
    %v158 = vrot.slane %v157, 4
    %v159 = vadd.f32 %v157, %v158
    %v160 = vrot.slane %v159, 2
    %v161 = vadd.f32 %v159, %v160
    %v162 = vrot.slane %v161, 1
    %v163 = vadd.f32 %v161, %v162
    %v164 = vsel %vm49, %v144, 0.0
    %v165 = vrot.slane %v164, 4
    %v166 = vadd.f32 %v164, %v165
    %v167 = vrot.slane %v166, 2
    %v168 = vadd.f32 %v166, %v167
    %v169 = vrot.slane %v168, 1
    %v170 = vadd.f32 %v168, %v169
    %v171 = vsel %vm49, %v145, 0.0
    %v172 = vrot.slane %v171, 4
    %v173 = vadd.f32 %v171, %v172
    %v174 = vrot.slane %v173, 2
    %v175 = vadd.f32 %v173, %v174
    %v176 = vrot.slane %v175, 1
    %v177 = vadd.f32 %v175, %v176
    %v178 = vlog2.pop %v113
    %v179 = vmul.f32 %v178, 0.6931472
    %v180 = vlog2.pop %v120
    %v181 = vmul.f32 %v180, 0.6931472
    %v182 = vlog2.pop %v127
    %v183 = vmul.f32 %v182, 0.6931472
    %v184 = vlog2.pop %v134
    %v185 = vmul.f32 %v184, 0.6931472
    %v186 = vrcp.pop %v113
    %v187 = vmul.f32 %v113, %v186
    %v188 = vsub.f32 1.0, %v187
    %v189 = vmul.f32 %v186, %v188
    %v190 = vadd.f32 %v186, %v189
    %vm191 = vweird.f32 %v113
    %vm192 = vweird.f32 %v186
    %vm193 = vmor %vm191, %vm192
    %v194 = vsel %vm193, %v186, %v190
    %v195 = vand.u32 2147483647, %v113
    %vm196 = vcmp.eq.f32.partialorder %v195, 8.507059e+37
    %v197 = vand.u32 %v113, 2147483648
    %v198 = vor.u32 1.1754944e-38, %v197
    %v199 = vsel %vm196, %v198, %v194
    %v200 = vrcp.pop %v120
    %v201 = vmul.f32 %v120, %v200
    %v202 = vsub.f32 1.0, %v201
    %v203 = vmul.f32 %v200, %v202
    %v204 = vadd.f32 %v200, %v203
    %vm205 = vweird.f32 %v120
    %vm206 = vweird.f32 %v200
    %vm207 = vmor %vm205, %vm206
    %v208 = vsel %vm207, %v200, %v204
    %v209 = vand.u32 2147483647, %v120
    %vm210 = vcmp.eq.f32.partialorder %v209, 8.507059e+37
    %v211 = vand.u32 %v120, 2147483648
    %v212 = vor.u32 1.1754944e-38, %v211
    %v213 = vsel %vm210, %v212, %v208
    %v214 = vrcp.pop %v127
    %v215 = vmul.f32 %v127, %v214
    %v216 = vsub.f32 1.0, %v215
    %v217 = vmul.f32 %v214, %v216
    %v218 = vadd.f32 %v214, %v217
    %vm219 = vweird.f32 %v127
    %vm220 = vweird.f32 %v214
    %vm221 = vmor %vm219, %vm220
    %v222 = vsel %vm221, %v214, %v218
    %v223 = vand.u32 2147483647, %v127
    %vm224 = vcmp.eq.f32.partialorder %v223, 8.507059e+37
    %v225 = vand.u32 %v127, 2147483648
    %v226 = vor.u32 1.1754944e-38, %v225
    %v227 = vsel %vm224, %v226, %v222
    %v228 = vrcp.pop %v134
    %v229 = vmul.f32 %v134, %v228
    %v230 = vsub.f32 1.0, %v229
    %v231 = vmul.f32 %v228, %v230
    %v232 = vadd.f32 %v228, %v231
    %vm233 = vweird.f32 %v134
    %vm234 = vweird.f32 %v228
    %vm235 = vmor %vm233, %vm234
    %v236 = vsel %vm235, %v228, %v232
    %v237 = vand.u32 2147483647, %v134
    %vm238 = vcmp.eq.f32.partialorder %v237, 8.507059e+37
    %v239 = vand.u32 %v134, 2147483648
    %v240 = vor.u32 1.1754944e-38, %v239
    %v241 = vsel %vm238, %v240, %v236
    %v242 = vmul.f32 %v156, %v199
    %v243 = vmul.f32 %v163, %v213
    %v244 = vmul.f32 %v170, %v227
    %v245 = vmul.f32 %v177, %v241
    %v246 = vsub.f32 %v179, %v242
    %v247 = vsub.f32 %v181, %v243
    %v248 = vsub.f32 %v183, %v244
    %v249 = vsub.f32 %v185, %v245
    %v250 = vld [vmem:[#allocation2] sm:$0x3]
    %v251 = vld [vmem:[#allocation2 + $0x2] sm:$0x3]
    %v256 = vrot.slane %v247, 7
    %v257 = vrot.slane %v249, 7
    %vm258 = vcmask 1040384
    %v259 = vsel %vm258, %v246, %v256
    %v260 = vsel %vm258, %v248, %v257
    %v263 = vadd.f32 %v250, %v259
    %v264 = vadd.f32 %v251, %v260
    %v265 = vlaneseq
    %vm266 = vcmp.ge.s32.totalorder %v265, 0
    %vm267 = vcmp.lt.s32.totalorder %v265, 256
    %vm268 = vmand %vm266, %vm267
    %269 = vst.msk [vmem:[#allocation2] sm:$0x3] %vm268, %v263
    %270 = vst.msk [vmem:[#allocation2 + $0x2] sm:$0x3] %vm268, %v264
    // Predicated region
    $region14: #{tpu_custom_call.1} parent=1 // pred_check
      %p271 = pneg %p24
    $region15: #{tpu_custom_call.1} parent=1 // pred_check_branch
      %273 = sbr.rel (%p271) target = $region17
    $region16: #{tpu_custom_call.1} parent=1 // pred_region
      %v274 = vld [vmem:[#allocation2] sm:$0x3]
      %v275 = vld [vmem:[#allocation2 + $0x2] sm:$0x3]
      %v278 = vperm.slane %v274, 0
      %v279 = vperm.slane %v274, 1
      %v280 = vperm.slane %v275, 0
      %v281 = vperm.slane %v275, 1
      %v286 = vsel %vm258, %v278, 0.0
      %v287 = vsel %vm258, %v279, 0.0
      %v288 = vadd.f32 %v286, %v287
      %289 = vadd.xlane.f32.xlu0 %v288
      %v290 = vpop.xlane.xlu0 %289
      %v291 = vsel %vm258, %v280, 0.0
      %v292 = vsel %vm258, %v281, 0.0
      %v293 = vadd.f32 %v291, %v292
      %294 = vadd.xlane.f32.xlu0 %v293
      %v295 = vpop.xlane.xlu0 %294
      %vm296 = vcmask 0
      %297 = vst.msk [vmem:[%s1] sm:$0x1] %vm296, %v290
      %298 = vst.msk [vmem:[%s1 + $0x1] sm:$0x1] %vm296, %v295
    $region17: #{tpu_custom_call.1} parent=1 // pred_fallthru
      _
    // Predicated region
    $region18: #{tpu_custom_call.1} parent=1 // pred_check
      _
    $region19: #{tpu_custom_call.1} parent=1 // pred_check_branch
      %300 = sbr.rel (0) target = $region21
    $region20: #{tpu_custom_call.1} parent=1 // pred_region
      _
    $region21: #{tpu_custom_call.1} parent=1 // pred_fallthru
      _
    // Predicated region
    $region22: #{tpu_custom_call.1} parent=1 // pred_check
      _
    $region23: #{tpu_custom_call.1} parent=1 // pred_check_branch
      %302 = sbr.rel (0) target = $region25
    $region24: #{tpu_custom_call.1} parent=1 // pred_region
      _
    $region25: #{tpu_custom_call.1} parent=1 // pred_fallthru
      _
    %303 = vsyncpa [#allocation4], 1

</llo_original>
